<compile_context>
chip_gen: v5e
topology: v5e:2x2
jax: 0.10.0
libtpu: 0.0.40
codegen_flags: <defaults>
</compile_context>

<pallas_src>
import jax
import jax.numpy as jnp
from jax.experimental import pallas as pl
from jax.experimental.pallas import tpu as pltpu

HIDDEN = 256          # hidden_dim of the MLP
TILE_B_MAX = 2048     # batch tile: ~10 MiB working set, well under VMEM limits
VMEM_LIMIT_BYTES = 32 * 1024 * 1024   # raise v5e's 16 MiB scoped default


def _round_up(n, m):
    return ((n + m - 1) // m) * m


def _cdiv(a, b):
    return (a + b - 1) // b


def mlp_kernel(x_ref, w1_ref, b1_ref, w2_ref, b2_ref, w3_ref, b3_ref,
               w4_ref, b4_ref, o_ref):
    """Fused 4-layer MLP: (Linear+ReLU)x3 + Linear on one batch tile."""
    x = x_ref[...].astype(jnp.float32)        # (tile_b, in_dim), in_dim tiny
    w1 = w1_ref[...]                          # (in_dim, HIDDEN), f32
    in_dim = x.shape[1]

    # Layer 1: K == input_dim (2) -> VPU outer product, no zero-padded MXU pass.
    h = b1_ref[...] + x[:, 0:1] * w1[0:1, :]
    for j in range(1, in_dim):                # static, tiny loop
        h = h + x[:, j:j + 1] * w1[j:j + 1, :]
    h = jnp.maximum(h, 0.0)

    # Layers 2 & 3: MXU matmuls. Operands in the weight storage dtype
    # (f32 or bf16); accumulation + bias + ReLU stay f32.
    h = jnp.maximum(
        jnp.dot(h.astype(w2_ref.dtype), w2_ref[...],
                preferred_element_type=jnp.float32) + b2_ref[...], 0.0)
    h = jnp.maximum(
        jnp.dot(h.astype(w3_ref.dtype), w3_ref[...],
                preferred_element_type=jnp.float32) + b3_ref[...], 0.0)

    # Layer 4: out_dim (=1) is far below a lane group -> keep it off the MXU.
    # VPU multiply against broadcast weight row + XLU cross-lane reduce.
    w4 = w4_ref[...]                          # (out_dim, HIDDEN), f32
    out_dim = w4.shape[0]
    cols = [jnp.sum(h * w4[j:j + 1, :], axis=-1, keepdims=True)
            for j in range(out_dim)]          # static, tiny loop
    o = cols[0] if out_dim == 1 else jnp.concatenate(cols, axis=-1)
    o_ref[...] = o + b4_ref[...]              # store only the real column(s)


def prepare_params(params, matmul_dtype=jnp.float32):
    """One-time packing: reshape biases, store MXU weights (w2/w3) in
    `matmul_dtype` (bf16 recommended), keep w1/w4 f32 (they run on the VPU).
    w4 is transposed to (out_dim, hidden) for the lane-reduce path."""
    (w1, b1), (w2, b2), (w3, b3), (w4, b4) = params
    prepared = {
        "w1": w1.astype(jnp.float32),                     # VPU -> f32
        "b1": b1.reshape(1, -1).astype(jnp.float32),
        "w2": w2.astype(matmul_dtype),
        "b2": b2.reshape(1, -1).astype(jnp.float32),
        "w3": w3.astype(matmul_dtype),
        "b3": b3.reshape(1, -1).astype(jnp.float32),
        "w4": jnp.transpose(w4).astype(jnp.float32),      # (out_dim, hidden)
        "b4": b4.reshape(1, -1).astype(jnp.float32),      # (1, out_dim)
    }
    return prepared, int(w4.shape[1])


@jax.jit
def mlp_forward(x, prepared):
    """x: (B, input_dim) float32 -> (B, out_dim) float32."""
    B, in_dim = x.shape
    hidden = prepared["w2"].shape[0]
    out_dim = prepared["w4"].shape[0]

    # Batch tile: as large as possible, but keep >=2 grid steps for large B so
    # the "parallel" batch axis spans both v7x TensorCores.
    tile_b = max(8, min(TILE_B_MAX, _round_up(_cdiv(B, 2), 8)))
    b_pad = _round_up(B, tile_b)
    if b_pad == B:
        x_p = x
    else:
        x_p = jnp.zeros((b_pad, in_dim), x.dtype).at[:B, :].set(x)

    weight_args = [prepared["w1"], prepared["b1"],
                   prepared["w2"], prepared["b2"],
                   prepared["w3"], prepared["b3"],
                   prepared["w4"], prepared["b4"]]

    grid = (pl.cdiv(b_pad, tile_b),)

    in_specs = [pl.BlockSpec((tile_b, in_dim), lambda i: (i, 0))]  # streamed
    # Weights/biases: constant block index -> fetched once, resident in VMEM.
    in_specs += [pl.BlockSpec(a.shape, lambda i: (0, 0)) for a in weight_args]
    out_spec = pl.BlockSpec((tile_b, out_dim), lambda i: (i, 0))

    flops = 2 * b_pad * (in_dim * hidden + 2 * hidden * hidden
                         + hidden * out_dim)
    bytes_accessed = (x_p.size * x_p.dtype.itemsize
                      + sum(int(a.size) * a.dtype.itemsize for a in weight_args)
                      + b_pad * out_dim * 4)

    out = pl.pallas_call(
        mlp_kernel,
        out_shape=jax.ShapeDtypeStruct((b_pad, out_dim), jnp.float32),
        grid=grid,
        in_specs=in_specs,
        out_specs=out_spec,
        compiler_params=pltpu.CompilerParams(
            dimension_semantics=("parallel",),
            vmem_limit_bytes=VMEM_LIMIT_BYTES),
        cost_estimate=pl.CostEstimate(flops=flops, transcendentals=0,
                                      bytes_accessed=bytes_accessed),
    )(x_p, *weight_args)
    return out[:B, :]


def init_mlp_params(key, input_dim=2, output_dim=1, hidden_dim=256,
                    num_layers=3):
    """Mimics PyTorch nn.Linear default init: U(-1/sqrt(fan_in), 1/sqrt(fan_in))
    for weight and bias.  Weights stored as (in, out)."""
    dims = [input_dim] + [hidden_dim] * num_layers + [output_dim]
    params = []
    for fan_in, fan_out in zip(dims[:-1], dims[1:]):
        key, kw, kb = jax.random.split(key, 3)
        bound = 1.0 / jnp.sqrt(float(fan_in))
        w = jax.random.uniform(kw, (fan_in, fan_out), jnp.float32,
                               minval=-bound, maxval=bound)
        b = jax.random.uniform(kb, (fan_out,), jnp.float32,
                               minval=-bound, maxval=bound)
        params.append((w, b))
    return params


def mlp_reference(x, params):
    """Plain-JAX reference identical to the PyTorch forward."""
    h = x
    for i, (w, b) in enumerate(params):
        h = h @ w + b
        if i < len(params) - 1:
            h = jnp.maximum(h, 0.0)
    return h


if __name__ == "__main__":
    key = jax.random.PRNGKey(0)
    k_param, k_x = jax.random.split(key)

    params = init_mlp_params(k_param, input_dim=2, output_dim=1,
                             hidden_dim=HIDDEN, num_layers=3)

    # Small deterministic input: batch=8, input_dim=2 (Van der Pol state).
    x = jax.random.normal(k_x, (8, 2), jnp.float32)
    ref = mlp_reference(x, params)

    # f32 matmul path (bit-accurate vs. reference).
    prep_f32, out_dim = prepare_params(params, matmul_dtype=jnp.float32)
    out = jax.block_until_ready(mlp_forward(x, prep_f32))
    assert out.shape == (8, 1), out.shape
    assert jnp.allclose(out, ref, atol=1e-4, rtol=1e-4), (
        "Pallas f32 output mismatch vs reference")

    # bf16 MXU-operand path (perf path); f32 accumulation / bias / ReLU.
    prep_bf16, _ = prepare_params(params, matmul_dtype=jnp.bfloat16)
    out_bf16 = jax.block_until_ready(mlp_forward(x, prep_bf16))
    assert jnp.allclose(out_bf16, ref, atol=5e-2, rtol=5e-2), (
        "Pallas bf16 output mismatch vs reference")

    # Medium batch: 2 grid steps (exercises the >=2-tile clamp / megacore path).
    xb = jax.random.normal(k_x, (1000, 2), jnp.float32)
    out_b = jax.block_until_ready(mlp_forward(xb, prep_f32))
    ref_b = mlp_reference(xb, params)
    assert out_b.shape == (1000, 1), out_b.shape
    assert jnp.allclose(out_b, ref_b, atol=1e-4, rtol=1e-4), (
        "Pallas medium-batch output mismatch vs reference")

    # Large batch: hits TILE_B_MAX=2048 tiles plus tail padding.
    xl = jax.random.normal(k_x, (5000, 2), jnp.float32)
    out_l = jax.block_until_ready(mlp_forward(xl, prep_f32))
    ref_l = mlp_reference(xl, params)
    assert out_l.shape == (5000, 1), out_l.shape
    assert jnp.allclose(out_l, ref_l, atol=1e-4, rtol=1e-4), (
        "Pallas large-batch output mismatch vs reference")

    print("KERNEL_OK")
</pallas_src>

<mosaic_0001>
module attributes {stable_mosaic.version = 11 : i64} {
  func.func @mlp_kernel(%arg0: i32, %arg1: memref<8x2xf32, #tpu.memory_space<vmem>>, %arg2: memref<2x256xf32, #tpu.memory_space<vmem>>, %arg3: memref<1x256xf32, #tpu.memory_space<vmem>>, %arg4: memref<256x256xf32, #tpu.memory_space<vmem>>, %arg5: memref<1x256xf32, #tpu.memory_space<vmem>>, %arg6: memref<256x256xf32, #tpu.memory_space<vmem>>, %arg7: memref<1x256xf32, #tpu.memory_space<vmem>>, %arg8: memref<1x256xf32, #tpu.memory_space<vmem>>, %arg9: memref<1x1xf32, #tpu.memory_space<vmem>>, %arg10: memref<8x1xf32, #tpu.memory_space<vmem>>) attributes {dimension_semantics = [#tpu.dimension_semantics<parallel>], iteration_bounds = array<i64: 1>, scalar_prefetch = 0 : i64, scratch_operands = 0 : i64, tpu.core_type = #tpu.core_type<tc>, window_params = [{transform_indices = @transform_0, window_bounds = array<i64: 8, 2>}, {pipeline_mode = #tpu.pipeline_mode<synchronous>, transform_indices = @transform_1, window_bounds = array<i64: 2, 256>}, {pipeline_mode = #tpu.pipeline_mode<synchronous>, transform_indices = @transform_2, window_bounds = array<i64: 1, 256>}, {pipeline_mode = #tpu.pipeline_mode<synchronous>, transform_indices = @transform_3, window_bounds = array<i64: 256, 256>}, {pipeline_mode = #tpu.pipeline_mode<synchronous>, transform_indices = @transform_4, window_bounds = array<i64: 1, 256>}, {pipeline_mode = #tpu.pipeline_mode<synchronous>, transform_indices = @transform_5, window_bounds = array<i64: 256, 256>}, {pipeline_mode = #tpu.pipeline_mode<synchronous>, transform_indices = @transform_6, window_bounds = array<i64: 1, 256>}, {pipeline_mode = #tpu.pipeline_mode<synchronous>, transform_indices = @transform_7, window_bounds = array<i64: 1, 256>}, {pipeline_mode = #tpu.pipeline_mode<synchronous>, transform_indices = @transform_8, window_bounds = array<i64: 1, 1>}, {transform_indices = @transform_9, window_bounds = array<i64: 8, 1>}]} {
    %c0 = arith.constant 0 : index
    %c0_0 = arith.constant 0 : index
    %0 = vector.load %arg1[%c0, %c0_0] : memref<8x2xf32, #tpu.memory_space<vmem>>, vector<8x2xf32>
    %c0_1 = arith.constant 0 : index
    %c0_2 = arith.constant 0 : index
    %1 = vector.load %arg2[%c0_1, %c0_2] : memref<2x256xf32, #tpu.memory_space<vmem>>, vector<2x256xf32>
    %c0_3 = arith.constant 0 : index
    %c0_4 = arith.constant 0 : index
    %2 = vector.load %arg3[%c0_3, %c0_4] : memref<1x256xf32, #tpu.memory_space<vmem>>, vector<1x256xf32>
    %3 = vector.extract_strided_slice %0 {offsets = [0, 0], sizes = [8, 1], strides = [1, 1]} : vector<8x2xf32> to vector<8x1xf32>
    %4 = vector.extract_strided_slice %1 {offsets = [0, 0], sizes = [1, 256], strides = [1, 1]} : vector<2x256xf32> to vector<1x256xf32>
    %5 = vector.broadcast %3 : vector<8x1xf32> to vector<8x256xf32>
    %6 = vector.broadcast %4 : vector<1x256xf32> to vector<8x256xf32>
    %7 = arith.mulf %5, %6 : vector<8x256xf32>
    %8 = vector.broadcast %2 : vector<1x256xf32> to vector<8x256xf32>
    %9 = arith.addf %8, %7 : vector<8x256xf32>
    %10 = vector.extract_strided_slice %0 {offsets = [0, 1], sizes = [8, 1], strides = [1, 1]} : vector<8x2xf32> to vector<8x1xf32>
    %11 = vector.extract_strided_slice %1 {offsets = [1, 0], sizes = [1, 256], strides = [1, 1]} : vector<2x256xf32> to vector<1x256xf32>
    %12 = vector.broadcast %10 : vector<8x1xf32> to vector<8x256xf32>
    %13 = vector.broadcast %11 : vector<1x256xf32> to vector<8x256xf32>
    %14 = arith.mulf %12, %13 : vector<8x256xf32>
    %15 = arith.addf %9, %14 : vector<8x256xf32>
    %cst = arith.constant 0.000000e+00 : f32
    %16 = vector.broadcast %cst : f32 to vector<8x256xf32>
    %17 = arith.maximumf %15, %16 : vector<8x256xf32>
    %c0_5 = arith.constant 0 : index
    %c0_6 = arith.constant 0 : index
    %18 = vector.load %arg4[%c0_5, %c0_6] : memref<256x256xf32, #tpu.memory_space<vmem>>, vector<256x256xf32>
    %cst_7 = arith.constant dense<0.000000e+00> : vector<8x256xf32>
    %19 = tpu.matmul %17, %18, %cst_7 {dimension_numbers = #tpu.dot_dimension_numbers<[1], [0], [0], [1], [0, 0, 1, 1], [], []>} : vector<8x256xf32>, vector<256x256xf32>, vector<8x256xf32> -> vector<8x256xf32>
    %c0_8 = arith.constant 0 : index
    %c0_9 = arith.constant 0 : index
    %20 = vector.load %arg5[%c0_8, %c0_9] : memref<1x256xf32, #tpu.memory_space<vmem>>, vector<1x256xf32>
    %21 = vector.broadcast %20 : vector<1x256xf32> to vector<8x256xf32>
    %22 = arith.addf %19, %21 : vector<8x256xf32>
    %cst_10 = arith.constant 0.000000e+00 : f32
    %23 = vector.broadcast %cst_10 : f32 to vector<8x256xf32>
    %24 = arith.maximumf %22, %23 : vector<8x256xf32>
    %c0_11 = arith.constant 0 : index
    %c0_12 = arith.constant 0 : index
    %25 = vector.load %arg6[%c0_11, %c0_12] : memref<256x256xf32, #tpu.memory_space<vmem>>, vector<256x256xf32>
    %cst_13 = arith.constant dense<0.000000e+00> : vector<8x256xf32>
    %26 = tpu.matmul %24, %25, %cst_13 {dimension_numbers = #tpu.dot_dimension_numbers<[1], [0], [0], [1], [0, 0, 1, 1], [], []>} : vector<8x256xf32>, vector<256x256xf32>, vector<8x256xf32> -> vector<8x256xf32>
    %c0_14 = arith.constant 0 : index
    %c0_15 = arith.constant 0 : index
    %27 = vector.load %arg7[%c0_14, %c0_15] : memref<1x256xf32, #tpu.memory_space<vmem>>, vector<1x256xf32>
    %28 = vector.broadcast %27 : vector<1x256xf32> to vector<8x256xf32>
    %29 = arith.addf %26, %28 : vector<8x256xf32>
    %cst_16 = arith.constant 0.000000e+00 : f32
    %30 = vector.broadcast %cst_16 : f32 to vector<8x256xf32>
    %31 = arith.maximumf %29, %30 : vector<8x256xf32>
    %c0_17 = arith.constant 0 : index
    %c0_18 = arith.constant 0 : index
    %32 = vector.load %arg8[%c0_17, %c0_18] : memref<1x256xf32, #tpu.memory_space<vmem>>, vector<1x256xf32>
    %33 = vector.broadcast %32 : vector<1x256xf32> to vector<8x256xf32>
    %34 = arith.mulf %31, %33 : vector<8x256xf32>
    %cst_19 = arith.constant dense<0.000000e+00> : vector<8xf32>
    %35 = vector.multi_reduction <add>, %34, %cst_19 [1] : vector<8x256xf32> to vector<8xf32>
    %36 = vector.shape_cast %35 : vector<8xf32> to vector<8x1xf32>
    %c0_20 = arith.constant 0 : index
    %c0_21 = arith.constant 0 : index
    %37 = vector.load %arg9[%c0_20, %c0_21] : memref<1x1xf32, #tpu.memory_space<vmem>>, vector<1x1xf32>
    %38 = vector.broadcast %37 : vector<1x1xf32> to vector<8x1xf32>
    %39 = arith.addf %36, %38 : vector<8x1xf32>
    %c0_22 = arith.constant 0 : index
    %c0_23 = arith.constant 0 : index
    %40 = vector.load %arg10[%c0_22, %c0_23] : memref<8x1xf32, #tpu.memory_space<vmem>>, vector<8x1xf32>
    tpu.vector_store %arg10[%c0_22, %c0_23], %39 {strides = array<i32>} : memref<8x1xf32, #tpu.memory_space<vmem>>, vector<8x1xf32>,
    return
  }
  func.func @transform_0(%arg0: i32) -> (i32, i32) {
    %c0_i32 = arith.constant 0 : i32
    %c0_i32_0 = arith.constant 0 : i32
    return %arg0, %c0_i32 : i32, i32
  }
  func.func @transform_1(%arg0: i32) -> (i32, i32) {
    %c0_i32 = arith.constant 0 : i32
    %c0_i32_0 = arith.constant 0 : i32
    %c0_i32_1 = arith.constant 0 : i32
    return %c0_i32, %c0_i32_0 : i32, i32
  }
  func.func @transform_2(%arg0: i32) -> (i32, i32) {
    %c0_i32 = arith.constant 0 : i32
    %c0_i32_0 = arith.constant 0 : i32
    %c0_i32_1 = arith.constant 0 : i32
    return %c0_i32, %c0_i32_0 : i32, i32
  }
  func.func @transform_3(%arg0: i32) -> (i32, i32) {
    %c0_i32 = arith.constant 0 : i32
    %c0_i32_0 = arith.constant 0 : i32
    %c0_i32_1 = arith.constant 0 : i32
    return %c0_i32, %c0_i32_0 : i32, i32
  }
  func.func @transform_4(%arg0: i32) -> (i32, i32) {
    %c0_i32 = arith.constant 0 : i32
    %c0_i32_0 = arith.constant 0 : i32
    %c0_i32_1 = arith.constant 0 : i32
    return %c0_i32, %c0_i32_0 : i32, i32
  }
  func.func @transform_5(%arg0: i32) -> (i32, i32) {
    %c0_i32 = arith.constant 0 : i32
    %c0_i32_0 = arith.constant 0 : i32
    %c0_i32_1 = arith.constant 0 : i32
    return %c0_i32, %c0_i32_0 : i32, i32
  }
  func.func @transform_6(%arg0: i32) -> (i32, i32) {
    %c0_i32 = arith.constant 0 : i32
    %c0_i32_0 = arith.constant 0 : i32
    %c0_i32_1 = arith.constant 0 : i32
    return %c0_i32, %c0_i32_0 : i32, i32
  }
  func.func @transform_7(%arg0: i32) -> (i32, i32) {
    %c0_i32 = arith.constant 0 : i32
    %c0_i32_0 = arith.constant 0 : i32
    %c0_i32_1 = arith.constant 0 : i32
    return %c0_i32, %c0_i32_0 : i32, i32
  }
  func.func @transform_8(%arg0: i32) -> (i32, i32) {
    %c0_i32 = arith.constant 0 : i32
    %c0_i32_0 = arith.constant 0 : i32
    %c0_i32_1 = arith.constant 0 : i32
    return %c0_i32, %c0_i32_0 : i32, i32
  }
  func.func @transform_9(%arg0: i32) -> (i32, i32) {
    %c0_i32 = arith.constant 0 : i32
    %c0_i32_0 = arith.constant 0 : i32
    return %arg0, %c0_i32 : i32, i32
  }
}

</mosaic_0001>

<llo_original>
// kernel: mlp_forward.1
$region0: #{mlp_forward.1}
  #allocation0 [shape = 'u32[]', space=smem, size = 0x4, offset = 0x4, fixed_abs, tag = 'smem constant byte address 0x4 - core index']
  #allocation1 [shape = 'u32[72,128]{1,0:T(1,128)}', space=vmem, size = 0x9000, scoped, tag = 'internal scratch']
  #allocation2 [shape = 'f32[1,1]{1,0:T(1,128)S(1)}', space=vmem, size = 0x200, scoped, tag = 'scoped memory for mlp_forward.1']
  %s0 = inlined_call_operand.vmem [shape: f32[8,2], index: 0, kind: input, shape index: {}]
  %s1 = inlined_call_operand.vmem [shape: f32[2,256], index: 1, kind: input, shape index: {}]
  %s2 = inlined_call_operand.vmem [shape: f32[1,256], index: 2, kind: input, shape index: {}]
  %s3 = inlined_call_operand.hbm [shape: f32[256,256], index: 3, kind: input, shape index: {}]
  %s4 = inlined_call_operand.vmem [shape: f32[1,256], index: 4, kind: input, shape index: {}]
  %s5 = inlined_call_operand.hbm [shape: f32[256,256], index: 5, kind: input, shape index: {}]
  %s6 = inlined_call_operand.vmem [shape: f32[1,256], index: 6, kind: input, shape index: {}]
  %s7 = inlined_call_operand.vmem [shape: f32[1,256], index: 7, kind: input, shape index: {}]
  %s8 = inlined_call_operand.<no memory space> [shape: f32[1,1], index: 8, kind: input, shape index: {}]
  %s9 = inlined_call_operand.vmem [shape: f32[8,1], index: 9, kind: output, shape index: {}]
  %s10 = sld [smem:[#allocation0]]
  $region54: #{mlp_forward.1} parent=0
    _
  %s12 = ssub.s32 1, %s10
  %s13 = scalar_select 0, %s12, %s10
  %v14 = vstv %s8
  %15 = vst [vmem:[#allocation2] sm:$0x1] %v14
  $region1: #{mlp_forward.1} parent=0
    #allocation3 [shape = 'u8[262144]{0}', space=vmem, size = 0x40000, scoped, tag = 'input window, operand 3, single buffered']
    #allocation4 [shape = 's32[1]{0}', space=sflag, size = 0x4, scoped, tag = 'scoped memory for mlp_forward.1']
    #allocation5 [shape = 'u8[262144]{0}', space=vmem, size = 0x40000, scoped, tag = 'input window, operand 5, single buffered']
    #allocation6 [shape = 's32[1]{0}', space=sflag, size = 0x4, scoped, tag = 'scoped memory for mlp_forward.1']
    %16 = vsyncpa [#allocation4], 0
    %17 = vsyncpa [#allocation6], 0
    // Predicated region
    $region2: #{mlp_forward.1} parent=1 // pred_check
      _
    $region3: #{mlp_forward.1} parent=1 // pred_check_branch
      %19 = sbr.rel (0) target = $region5
    $region4: #{mlp_forward.1} parent=1 // pred_region
      _
    $region5: #{mlp_forward.1} parent=1 // pred_fallthru
      _
    // Predicated region
    $region6: #{mlp_forward.1} parent=1 // pred_check
      _
    $region7: #{mlp_forward.1} parent=1 // pred_check_branch
      %21 = sbr.rel (0) target = $region9
    $region8: #{mlp_forward.1} parent=1 // pred_region
      _
    $region9: #{mlp_forward.1} parent=1 // pred_fallthru
      _
    // Predicated region
    $region10: #{mlp_forward.1} parent=1 // pred_check
      _
    $region11: #{mlp_forward.1} parent=1 // pred_check_branch
      %23 = sbr.rel (0) target = $region13
    $region12: #{mlp_forward.1} parent=1 // pred_region
      _
    $region13: #{mlp_forward.1} parent=1 // pred_fallthru
      _
    // Predicated region
    $region14: #{mlp_forward.1} parent=1 // pred_check
      _
    $region15: #{mlp_forward.1} parent=1 // pred_check_branch
      %25 = sbr.rel (0) target = $region17
    $region16: #{mlp_forward.1} parent=1 // pred_region
      %27 = vsyncadd [#allocation4], 0
      %s28 = sshll.u32 %s3, 4
      %s29 = int_to_ptr.hbm [resolvable:$true] %s28
      %s30 = sshll.u32 [#allocation3], 4
      %s31 = int_to_ptr.vmem [resolvable:$true] %s30
      %36 = dma.hbm_to_vmem [thread:$0]  %s29, 8192, %s31, [#allocation4], 256, 256, 16
    $region17: #{mlp_forward.1} parent=1 // pred_fallthru
      _
    // Predicated region
    $region18: #{mlp_forward.1} parent=1 // pred_check
      _
    $region19: #{mlp_forward.1} parent=1 // pred_check_branch
      %38 = sbr.rel (0) target = $region21
    $region20: #{mlp_forward.1} parent=1 // pred_region
      _
    $region21: #{mlp_forward.1} parent=1 // pred_fallthru
      _
    // Predicated region
    $region22: #{mlp_forward.1} parent=1 // pred_check
      _
    $region23: #{mlp_forward.1} parent=1 // pred_check_branch
      %40 = sbr.rel (0) target = $region25
    $region24: #{mlp_forward.1} parent=1 // pred_region
      %42 = vsyncadd [#allocation6], 0
      %s43 = sshll.u32 %s5, 4
      %s44 = int_to_ptr.hbm [resolvable:$true] %s43
      %s45 = sshll.u32 [#allocation5], 4
      %s46 = int_to_ptr.vmem [resolvable:$true] %s45
      %51 = dma.hbm_to_vmem [thread:$0]  %s44, 8192, %s46, [#allocation6], 256, 256, 16
    $region25: #{mlp_forward.1} parent=1 // pred_fallthru
      _
    // Predicated region
    $region26: #{mlp_forward.1} parent=1 // pred_check
      _
    $region27: #{mlp_forward.1} parent=1 // pred_check_branch
      %53 = sbr.rel (0) target = $region29
    $region28: #{mlp_forward.1} parent=1 // pred_region
      _
    $region29: #{mlp_forward.1} parent=1 // pred_fallthru
      _
    // Predicated region
    $region30: #{mlp_forward.1} parent=1 // pred_check
      _
    $region31: #{mlp_forward.1} parent=1 // pred_check_branch
      %55 = sbr.rel (0) target = $region33
    $region32: #{mlp_forward.1} parent=1 // pred_region
      _
    $region33: #{mlp_forward.1} parent=1 // pred_fallthru
      _
    // Predicated region
    $region34: #{mlp_forward.1} parent=1 // pred_check
      _
    $region35: #{mlp_forward.1} parent=1 // pred_check_branch
      %57 = sbr.rel (0) target = $region37
    $region36: #{mlp_forward.1} parent=1 // pred_region
      _
    $region37: #{mlp_forward.1} parent=1 // pred_fallthru
      _
    // Predicated region
    $region38: #{mlp_forward.1} parent=1 // pred_check
      _
    $region39: #{mlp_forward.1} parent=1 // pred_check_branch
      %59 = sbr.rel (0) target = $region41
    $region40: #{mlp_forward.1} parent=1 // pred_region
      %61 = dma.done [#allocation4], 8192
    $region41: #{mlp_forward.1} parent=1 // pred_fallthru
      _
    // Predicated region
    $region42: #{mlp_forward.1} parent=1 // pred_check
      _
    $region43: #{mlp_forward.1} parent=1 // pred_check_branch
      %63 = sbr.rel (0) target = $region45
    $region44: #{mlp_forward.1} parent=1 // pred_region
      %65 = dma.done [#allocation6], 8192
    $region45: #{mlp_forward.1} parent=1 // pred_fallthru
      _
    %v66 = vld [vmem:[%s0] sm:$0xff]
    %v67 = vld [vmem:[%s1] sm:$0xf]
    %v68 = vld [vmem:[%s2] sm:$0x3]
    %70 = vset.pattern.permute.xlu0 0
    %71 = vperm.xlu0 %70, %v66
    %v72 = vpop.permute.xlu0 %71
    %v75 = vperm.slane %v67, 0
    %v76 = vperm.slane %v67, 2
    %v79 = vperm.slane %v75, 0
    %v80 = vperm.slane %v76, 0
    %v81 = vmul.f32 %v72, %v79
    %v82 = vmul.f32 %v72, %v80
    %v84 = vperm.slane %v68, 0
    %v85 = vperm.slane %v68, 1
    %v88 = vadd.f32 %v84, %v81
    %v89 = vadd.f32 %v85, %v82
    %90 = vset.pattern.permute.xlu0 1
    %91 = vperm.xlu0 %90, %v66
    %v92 = vpop.permute.xlu0 %91
    %v94 = vperm.slane %v67, 1
    %v95 = vperm.slane %v67, 3
    %v98 = vperm.slane %v94, 1
    %v99 = vperm.slane %v95, 1
    %v100 = vmul.f32 %v92, %v98
    %v101 = vmul.f32 %v92, %v99
    %v102 = vadd.f32 %v88, %v100
    %v103 = vadd.f32 %v89, %v101
    %v104 = vmax.f32 %v102, 0.0
    %v105 = vmax.f32 %v103, 0.0
    %v106 = vld [vmem:[#allocation3] sm:$0xff]
    %v107 = vld [vmem:[#allocation3 + $0x8] sm:$0xff]
    %v108 = vld [vmem:[#allocation3 + $0x10] sm:$0xff]
    %v109 = vld [vmem:[#allocation3 + $0x18] sm:$0xff]
    %v110 = vld [vmem:[#allocation3 + $0x20] sm:$0xff]
    %v111 = vld [vmem:[#allocation3 + $0x28] sm:$0xff]
    %v112 = vld [vmem:[#allocation3 + $0x30] sm:$0xff]
    %v113 = vld [vmem:[#allocation3 + $0x38] sm:$0xff]
    %v114 = vld [vmem:[#allocation3 + $0x40] sm:$0xff]
    %v115 = vld [vmem:[#allocation3 + $0x48] sm:$0xff]
    %v116 = vld [vmem:[#allocation3 + $0x50] sm:$0xff]
    %v117 = vld [vmem:[#allocation3 + $0x58] sm:$0xff]
    %v118 = vld [vmem:[#allocation3 + $0x60] sm:$0xff]
    %v119 = vld [vmem:[#allocation3 + $0x68] sm:$0xff]
    %v120 = vld [vmem:[#allocation3 + $0x70] sm:$0xff]
    %v121 = vld [vmem:[#allocation3 + $0x78] sm:$0xff]
    %v122 = vld [vmem:[#allocation3 + $0x80] sm:$0xff]
    %v123 = vld [vmem:[#allocation3 + $0x88] sm:$0xff]
    %v124 = vld [vmem:[#allocation3 + $0x90] sm:$0xff]
    %v125 = vld [vmem:[#allocation3 + $0x98] sm:$0xff]
    %v126 = vld [vmem:[#allocation3 + $0xa0] sm:$0xff]
    %v127 = vld [vmem:[#allocation3 + $0xa8] sm:$0xff]
    %v128 = vld [vmem:[#allocation3 + $0xb0] sm:$0xff]
    %v129 = vld [vmem:[#allocation3 + $0xb8] sm:$0xff]
    %v130 = vld [vmem:[#allocation3 + $0xc0] sm:$0xff]
    %v131 = vld [vmem:[#allocation3 + $0xc8] sm:$0xff]
    %v132 = vld [vmem:[#allocation3 + $0xd0] sm:$0xff]
    %v133 = vld [vmem:[#allocation3 + $0xd8] sm:$0xff]
    %v134 = vld [vmem:[#allocation3 + $0xe0] sm:$0xff]
    %v135 = vld [vmem:[#allocation3 + $0xe8] sm:$0xff]
    %v136 = vld [vmem:[#allocation3 + $0xf0] sm:$0xff]
    %v137 = vld [vmem:[#allocation3 + $0xf8] sm:$0xff]
    %v138 = vld [vmem:[#allocation3 + $0x100] sm:$0xff]
    %v139 = vld [vmem:[#allocation3 + $0x108] sm:$0xff]
    %v140 = vld [vmem:[#allocation3 + $0x110] sm:$0xff]
    %v141 = vld [vmem:[#allocation3 + $0x118] sm:$0xff]
    %v142 = vld [vmem:[#allocation3 + $0x120] sm:$0xff]
    %v143 = vld [vmem:[#allocation3 + $0x128] sm:$0xff]
    %v144 = vld [vmem:[#allocation3 + $0x130] sm:$0xff]
    %v145 = vld [vmem:[#allocation3 + $0x138] sm:$0xff]
    %v146 = vld [vmem:[#allocation3 + $0x140] sm:$0xff]
    %v147 = vld [vmem:[#allocation3 + $0x148] sm:$0xff]
    %v148 = vld [vmem:[#allocation3 + $0x150] sm:$0xff]
    %v149 = vld [vmem:[#allocation3 + $0x158] sm:$0xff]
    %v150 = vld [vmem:[#allocation3 + $0x160] sm:$0xff]
    %v151 = vld [vmem:[#allocation3 + $0x168] sm:$0xff]
    %v152 = vld [vmem:[#allocation3 + $0x170] sm:$0xff]
    %v153 = vld [vmem:[#allocation3 + $0x178] sm:$0xff]
    %v154 = vld [vmem:[#allocation3 + $0x180] sm:$0xff]
    %v155 = vld [vmem:[#allocation3 + $0x188] sm:$0xff]
    %v156 = vld [vmem:[#allocation3 + $0x190] sm:$0xff]
    %v157 = vld [vmem:[#allocation3 + $0x198] sm:$0xff]
    %v158 = vld [vmem:[#allocation3 + $0x1a0] sm:$0xff]
    %v159 = vld [vmem:[#allocation3 + $0x1a8] sm:$0xff]
    %v160 = vld [vmem:[#allocation3 + $0x1b0] sm:$0xff]
    %v161 = vld [vmem:[#allocation3 + $0x1b8] sm:$0xff]
    %v162 = vld [vmem:[#allocation3 + $0x1c0] sm:$0xff]
    %v163 = vld [vmem:[#allocation3 + $0x1c8] sm:$0xff]
    %v164 = vld [vmem:[#allocation3 + $0x1d0] sm:$0xff]
    %v165 = vld [vmem:[#allocation3 + $0x1d8] sm:$0xff]
    %v166 = vld [vmem:[#allocation3 + $0x1e0] sm:$0xff]
    %v167 = vld [vmem:[#allocation3 + $0x1e8] sm:$0xff]
    %v168 = vld [vmem:[#allocation3 + $0x1f0] sm:$0xff]
    %v169 = vld [vmem:[#allocation3 + $0x1f8] sm:$0xff]
    %v170 = vld [vmem:[%s4] sm:$0x3]
    %v172 = vperm.slane %v170, 0
    %v173 = vperm.slane %v170, 1
    %176 = vmatpush.msra.mxu0 %v136
    %177 = vmatpush.msra.mxu0 %v134
    %178 = vmatpush.msra.mxu0 %v132
    %179 = vmatpush.msra.mxu0 %v130
    %180 = vmatpush.msra.mxu0 %v128
    %181 = vmatpush.msra.mxu0 %v126
    %182 = vmatpush.msra.mxu0 %v124
    %183 = vmatpush.msra.mxu0 %v122
    %184 = vmatpush.msra.mxu0 %v120
    %185 = vmatpush.msra.mxu0 %v118
    %186 = vmatpush.msra.mxu0 %v116
    %187 = vmatpush.msra.mxu0 %v114
    %188 = vmatpush.msra.mxu0 %v112
    %189 = vmatpush.msra.mxu0 %v110
    %190 = vmatpush.msra.mxu0 %v108
    %191 = vmatpush.msra.mxu0 %v106
    %192 = vmatmul.f32.gmra.mxu0 %v104
    %v193 = vpop.f32.mrf.mxu0
    %v194 = vadd.f32 %v172, %v193
    %195 = vdwg.mxu0
    %196 = vmatpush.msra.mxu0 %v168
    %197 = vmatpush.msra.mxu0 %v166
    %198 = vmatpush.msra.mxu0 %v164
    %199 = vmatpush.msra.mxu0 %v162
    %200 = vmatpush.msra.mxu0 %v160
    %201 = vmatpush.msra.mxu0 %v158
    %202 = vmatpush.msra.mxu0 %v156
    %203 = vmatpush.msra.mxu0 %v154
    %204 = vmatpush.msra.mxu0 %v152
    %205 = vmatpush.msra.mxu0 %v150
    %206 = vmatpush.msra.mxu0 %v148
    %207 = vmatpush.msra.mxu0 %v146
    %208 = vmatpush.msra.mxu0 %v144
    %209 = vmatpush.msra.mxu0 %v142
    %210 = vmatpush.msra.mxu0 %v140
    %211 = vmatpush.msra.mxu0 %v138
    %212 = vmatmul.f32.gmra.mxu0 %v105
    %v213 = vpop.f32.mrf.mxu0
    %v214 = vadd.f32 %v194, %v213
    %215 = vdwg.mxu0
    %216 = vmatpush.msra.mxu0 %v137
    %217 = vmatpush.msra.mxu0 %v135
    %218 = vmatpush.msra.mxu0 %v133
    %219 = vmatpush.msra.mxu0 %v131
    %220 = vmatpush.msra.mxu0 %v129
    %221 = vmatpush.msra.mxu0 %v127
    %222 = vmatpush.msra.mxu0 %v125
    %223 = vmatpush.msra.mxu0 %v123
    %224 = vmatpush.msra.mxu0 %v121
    %225 = vmatpush.msra.mxu0 %v119
    %226 = vmatpush.msra.mxu0 %v117
    %227 = vmatpush.msra.mxu0 %v115
    %228 = vmatpush.msra.mxu0 %v113
    %229 = vmatpush.msra.mxu0 %v111
    %230 = vmatpush.msra.mxu0 %v109
    %231 = vmatpush.msra.mxu0 %v107
    %232 = vmatmul.f32.gmra.mxu0 %v104
    %v233 = vpop.f32.mrf.mxu0
    %v234 = vadd.f32 %v173, %v233
    %235 = vdwg.mxu0
    %236 = vmatpush.msra.mxu0 %v169
    %237 = vmatpush.msra.mxu0 %v167
    %238 = vmatpush.msra.mxu0 %v165
    %239 = vmatpush.msra.mxu0 %v163
    %240 = vmatpush.msra.mxu0 %v161
    %241 = vmatpush.msra.mxu0 %v159
    %242 = vmatpush.msra.mxu0 %v157
    %243 = vmatpush.msra.mxu0 %v155
    %244 = vmatpush.msra.mxu0 %v153
    %245 = vmatpush.msra.mxu0 %v151
    %246 = vmatpush.msra.mxu0 %v149
    %247 = vmatpush.msra.mxu0 %v147
    %248 = vmatpush.msra.mxu0 %v145
    %249 = vmatpush.msra.mxu0 %v143
    %250 = vmatpush.msra.mxu0 %v141
    %251 = vmatpush.msra.mxu0 %v139
    %252 = vmatmul.f32.gmra.mxu0 %v105
    %v253 = vpop.f32.mrf.mxu0
    %v254 = vadd.f32 %v234, %v253
    %255 = vdwg.mxu0
    %v256 = vmax.f32 %v214, 0.0
    %v257 = vmax.f32 %v254, 0.0
    %v258 = vld [vmem:[#allocation5] sm:$0xff]
    %v259 = vld [vmem:[#allocation5 + $0x8] sm:$0xff]
    %v260 = vld [vmem:[#allocation5 + $0x10] sm:$0xff]
    %v261 = vld [vmem:[#allocation5 + $0x18] sm:$0xff]
    %v262 = vld [vmem:[#allocation5 + $0x20] sm:$0xff]
    %v263 = vld [vmem:[#allocation5 + $0x28] sm:$0xff]
    %v264 = vld [vmem:[#allocation5 + $0x30] sm:$0xff]
    %v265 = vld [vmem:[#allocation5 + $0x38] sm:$0xff]
    %v266 = vld [vmem:[#allocation5 + $0x40] sm:$0xff]
    %v267 = vld [vmem:[#allocation5 + $0x48] sm:$0xff]
    %v268 = vld [vmem:[#allocation5 + $0x50] sm:$0xff]
    %v269 = vld [vmem:[#allocation5 + $0x58] sm:$0xff]
    %v270 = vld [vmem:[#allocation5 + $0x60] sm:$0xff]
    %v271 = vld [vmem:[#allocation5 + $0x68] sm:$0xff]
    %v272 = vld [vmem:[#allocation5 + $0x70] sm:$0xff]
    %v273 = vld [vmem:[#allocation5 + $0x78] sm:$0xff]
    %v274 = vld [vmem:[#allocation5 + $0x80] sm:$0xff]
    %v275 = vld [vmem:[#allocation5 + $0x88] sm:$0xff]
    %v276 = vld [vmem:[#allocation5 + $0x90] sm:$0xff]
    %v277 = vld [vmem:[#allocation5 + $0x98] sm:$0xff]
    %v278 = vld [vmem:[#allocation5 + $0xa0] sm:$0xff]
    %v279 = vld [vmem:[#allocation5 + $0xa8] sm:$0xff]
    %v280 = vld [vmem:[#allocation5 + $0xb0] sm:$0xff]
    %v281 = vld [vmem:[#allocation5 + $0xb8] sm:$0xff]
    %v282 = vld [vmem:[#allocation5 + $0xc0] sm:$0xff]
    %v283 = vld [vmem:[#allocation5 + $0xc8] sm:$0xff]
    %v284 = vld [vmem:[#allocation5 + $0xd0] sm:$0xff]
    %v285 = vld [vmem:[#allocation5 + $0xd8] sm:$0xff]
    %v286 = vld [vmem:[#allocation5 + $0xe0] sm:$0xff]
    %v287 = vld [vmem:[#allocation5 + $0xe8] sm:$0xff]
    %v288 = vld [vmem:[#allocation5 + $0xf0] sm:$0xff]
    %v289 = vld [vmem:[#allocation5 + $0xf8] sm:$0xff]
    %v290 = vld [vmem:[#allocation5 + $0x100] sm:$0xff]
    %v291 = vld [vmem:[#allocation5 + $0x108] sm:$0xff]
    %v292 = vld [vmem:[#allocation5 + $0x110] sm:$0xff]
    %v293 = vld [vmem:[#allocation5 + $0x118] sm:$0xff]
    %v294 = vld [vmem:[#allocation5 + $0x120] sm:$0xff]
    %v295 = vld [vmem:[#allocation5 + $0x128] sm:$0xff]
    %v296 = vld [vmem:[#allocation5 + $0x130] sm:$0xff]
    %v297 = vld [vmem:[#allocation5 + $0x138] sm:$0xff]
    %v298 = vld [vmem:[#allocation5 + $0x140] sm:$0xff]
    %v299 = vld [vmem:[#allocation5 + $0x148] sm:$0xff]
    %v300 = vld [vmem:[#allocation5 + $0x150] sm:$0xff]
    %v301 = vld [vmem:[#allocation5 + $0x158] sm:$0xff]
    %v302 = vld [vmem:[#allocation5 + $0x160] sm:$0xff]
    %v303 = vld [vmem:[#allocation5 + $0x168] sm:$0xff]
    %v304 = vld [vmem:[#allocation5 + $0x170] sm:$0xff]
    %v305 = vld [vmem:[#allocation5 + $0x178] sm:$0xff]
    %v306 = vld [vmem:[#allocation5 + $0x180] sm:$0xff]
    %v307 = vld [vmem:[#allocation5 + $0x188] sm:$0xff]
    %v308 = vld [vmem:[#allocation5 + $0x190] sm:$0xff]
    %v309 = vld [vmem:[#allocation5 + $0x198] sm:$0xff]
    %v310 = vld [vmem:[#allocation5 + $0x1a0] sm:$0xff]
    %v311 = vld [vmem:[#allocation5 + $0x1a8] sm:$0xff]
    %v312 = vld [vmem:[#allocation5 + $0x1b0] sm:$0xff]
    %v313 = vld [vmem:[#allocation5 + $0x1b8] sm:$0xff]
    %v314 = vld [vmem:[#allocation5 + $0x1c0] sm:$0xff]
    %v315 = vld [vmem:[#allocation5 + $0x1c8] sm:$0xff]
    %v316 = vld [vmem:[#allocation5 + $0x1d0] sm:$0xff]
    %v317 = vld [vmem:[#allocation5 + $0x1d8] sm:$0xff]
    %v318 = vld [vmem:[#allocation5 + $0x1e0] sm:$0xff]
    %v319 = vld [vmem:[#allocation5 + $0x1e8] sm:$0xff]
    %v320 = vld [vmem:[#allocation5 + $0x1f0] sm:$0xff]
    %v321 = vld [vmem:[#allocation5 + $0x1f8] sm:$0xff]
    %v322 = vld [vmem:[%s6] sm:$0x3]
    %v324 = vperm.slane %v322, 0
    %v325 = vperm.slane %v322, 1
    %328 = vmatpush.msra.mxu0 %v288
    %329 = vmatpush.msra.mxu0 %v286
    %330 = vmatpush.msra.mxu0 %v284
    %331 = vmatpush.msra.mxu0 %v282
    %332 = vmatpush.msra.mxu0 %v280
    %333 = vmatpush.msra.mxu0 %v278
    %334 = vmatpush.msra.mxu0 %v276
    %335 = vmatpush.msra.mxu0 %v274
    %336 = vmatpush.msra.mxu0 %v272
    %337 = vmatpush.msra.mxu0 %v270
    %338 = vmatpush.msra.mxu0 %v268
    %339 = vmatpush.msra.mxu0 %v266
    %340 = vmatpush.msra.mxu0 %v264
    %341 = vmatpush.msra.mxu0 %v262
    %342 = vmatpush.msra.mxu0 %v260
    %343 = vmatpush.msra.mxu0 %v258
    %344 = vmatmul.f32.gmra.mxu0 %v256
    %v345 = vpop.f32.mrf.mxu0
    %v346 = vadd.f32 %v324, %v345
    %347 = vdwg.mxu0
    %348 = vmatpush.msra.mxu0 %v320
    %349 = vmatpush.msra.mxu0 %v318
    %350 = vmatpush.msra.mxu0 %v316
    %351 = vmatpush.msra.mxu0 %v314
    %352 = vmatpush.msra.mxu0 %v312
    %353 = vmatpush.msra.mxu0 %v310
    %354 = vmatpush.msra.mxu0 %v308
    %355 = vmatpush.msra.mxu0 %v306
    %356 = vmatpush.msra.mxu0 %v304
    %357 = vmatpush.msra.mxu0 %v302
    %358 = vmatpush.msra.mxu0 %v300
    %359 = vmatpush.msra.mxu0 %v298
    %360 = vmatpush.msra.mxu0 %v296
    %361 = vmatpush.msra.mxu0 %v294
    %362 = vmatpush.msra.mxu0 %v292
    %363 = vmatpush.msra.mxu0 %v290
    %364 = vmatmul.f32.gmra.mxu0 %v257
    %v365 = vpop.f32.mrf.mxu0
    %v366 = vadd.f32 %v346, %v365
    %367 = vdwg.mxu0
    %368 = vmatpush.msra.mxu0 %v289
    %369 = vmatpush.msra.mxu0 %v287
    %370 = vmatpush.msra.mxu0 %v285
    %371 = vmatpush.msra.mxu0 %v283
    %372 = vmatpush.msra.mxu0 %v281
    %373 = vmatpush.msra.mxu0 %v279
    %374 = vmatpush.msra.mxu0 %v277
    %375 = vmatpush.msra.mxu0 %v275
    %376 = vmatpush.msra.mxu0 %v273
    %377 = vmatpush.msra.mxu0 %v271
    %378 = vmatpush.msra.mxu0 %v269
    %379 = vmatpush.msra.mxu0 %v267
    %380 = vmatpush.msra.mxu0 %v265
    %381 = vmatpush.msra.mxu0 %v263
    %382 = vmatpush.msra.mxu0 %v261
    %383 = vmatpush.msra.mxu0 %v259
    %384 = vmatmul.f32.gmra.mxu0 %v256
    %v385 = vpop.f32.mrf.mxu0
    %v386 = vadd.f32 %v325, %v385
    %387 = vdwg.mxu0
    %388 = vmatpush.msra.mxu0 %v321
    %389 = vmatpush.msra.mxu0 %v319
    %390 = vmatpush.msra.mxu0 %v317
    %391 = vmatpush.msra.mxu0 %v315
    %392 = vmatpush.msra.mxu0 %v313
    %393 = vmatpush.msra.mxu0 %v311
    %394 = vmatpush.msra.mxu0 %v309
    %395 = vmatpush.msra.mxu0 %v307
    %396 = vmatpush.msra.mxu0 %v305
    %397 = vmatpush.msra.mxu0 %v303
    %398 = vmatpush.msra.mxu0 %v301
    %399 = vmatpush.msra.mxu0 %v299
    %400 = vmatpush.msra.mxu0 %v297
    %401 = vmatpush.msra.mxu0 %v295
    %402 = vmatpush.msra.mxu0 %v293
    %403 = vmatpush.msra.mxu0 %v291
    %404 = vmatmul.f32.gmra.mxu0 %v257
    %v405 = vpop.f32.mrf.mxu0
    %v406 = vadd.f32 %v386, %v405
    %407 = vdwg.mxu0
    %v408 = vmax.f32 %v366, 0.0
    %v409 = vmax.f32 %v406, 0.0
    %v410 = vld [vmem:[%s7] sm:$0x3]
    %v412 = vperm.slane %v410, 0
    %v413 = vperm.slane %v410, 1
    %v416 = vmul.f32 %v408, %v412
    %v417 = vmul.f32 %v409, %v413
    %v418 = vadd.f32 %v416, %v417
    %419 = vadd.xlane.f32.xlu0 %v418
    %v420 = vpop.xlane.xlu0 %419
    %v421 = vld [vmem:[#allocation2] sm:$0x1]
    %v423 = vperm.slane %v421, 0
    %v425 = vadd.f32 %v420, %v423
    %vm426 = vcmask 7168
    %427 = vst.msk [vmem:[%s9] sm:$0xff] %vm426, %v425
    // Predicated region
    $region46: #{mlp_forward.1} parent=1 // pred_check
      _
    $region47: #{mlp_forward.1} parent=1 // pred_check_branch
      %429 = sbr.rel (0) target = $region49
    $region48: #{mlp_forward.1} parent=1 // pred_region
      _
    $region49: #{mlp_forward.1} parent=1 // pred_fallthru
      _
    // Predicated region
    $region50: #{mlp_forward.1} parent=1 // pred_check
      _
    $region51: #{mlp_forward.1} parent=1 // pred_check_branch
      %431 = sbr.rel (0) target = $region53
    $region52: #{mlp_forward.1} parent=1 // pred_region
      _
    $region53: #{mlp_forward.1} parent=1 // pred_fallthru
      _
    %432 = vsyncpa [#allocation4], 1
    %433 = vsyncpa [#allocation6], 1

</llo_original>
